<compile_context>
chip_gen: v7x
topology: tpu7x:2x2x1
jax: 0.10.0
libtpu: 0.0.40
codegen_flags: <defaults>
</compile_context>

<pallas_src>
import functools

import jax
import jax.numpy as jnp
from jax.experimental import pallas as pl
from jax.experimental.pallas import tpu as pltpu


def _round_up(v, m):
    return ((v + m - 1) // m) * m


def _choose_block_rows(n, c, in_itemsize):
    """Largest row-block that keeps double-buffered staging + temporaries ~<=32MiB."""
    budget = 32 * 1024 * 1024
    # 2 staging buffers of the input dtype + a handful of f32 (TM, C) temporaries.
    per_row = c * (2 * in_itemsize + 16)
    tm = budget // max(per_row, 1)
    tm = min(int(tm), 1024, _round_up(n, 8))
    tm = max(8, (tm // 8) * 8)
    return tm


def _label_smoothing_kernel(x_ref, t_ref, out_ref, *, confidence, smoothing, n_rows):
    # x_ref: (TM, C) logits block in VMEM; t_ref: (TM, 1) int32 targets block.
    # out_ref: (1, 1) f32 SMEM block -> this grid step's partial loss sum.
    i = pl.program_id(0)

    x = x_ref[...].astype(jnp.float32)          # upcast per-tile (bf16 inputs OK)
    t = t_ref[...]                               # (TM, 1) int32
    tm, c = x.shape

    # Numerically stable logsumexp pieces; full logprobs never materialized.
    m = jnp.max(x, axis=-1, keepdims=True)                           # (TM, 1)
    shifted = x - m                                                  # (TM, C)
    lse = jnp.log(jnp.sum(jnp.exp(shifted), axis=-1, keepdims=True)) # (TM, 1)

    # One-hot gather of shifted[target] (TPU-friendly) and row-sum of shifted.
    col_ids = jax.lax.broadcasted_iota(jnp.int32, shifted.shape, 1)
    picked = jnp.sum(jnp.where(col_ids == t, shifted, 0.0),
                     axis=-1, keepdims=True)                         # (TM, 1)
    row_sum = jnp.sum(shifted, axis=-1, keepdims=True)               # (TM, 1)

    # loss_row = confidence*(lse - picked) + smoothing*(lse - row_sum / C)
    loss_row = ((confidence + smoothing) * lse
                - confidence * picked
                - (smoothing / c) * row_sum)                         # (TM, 1)

    # Mask padded rows of the final (remainder) block.
    row_ids = jax.lax.broadcasted_iota(jnp.int32, (tm, 1), 0) + i * tm
    loss_row = jnp.where(row_ids < n_rows, loss_row, 0.0)

    out_ref[0, 0] = jnp.sum(loss_row)


def label_smoothing_loss(x, target, smoothing=0.1, block_rows=None):
    """x: (N, C) float logits, target: (N,) int class indices -> scalar loss."""
    confidence = 1.0 - smoothing
    n, c = x.shape
    t2d = target.astype(jnp.int32).reshape(n, 1)

    if block_rows is None:
        tm = _choose_block_rows(n, c, jnp.dtype(x.dtype).itemsize)
    else:
        tm = int(block_rows)
    num_blocks = pl.cdiv(n, tm)

    kernel = functools.partial(
        _label_smoothing_kernel,
        confidence=confidence,
        smoothing=smoothing,
        n_rows=n,
    )

    partials = pl.pallas_call(
        kernel,
        out_shape=jax.ShapeDtypeStruct((num_blocks, 1), jnp.float32),
        grid=(num_blocks,),
        in_specs=[
            pl.BlockSpec((tm, c), lambda i: (i, 0)),   # logits row-block
            pl.BlockSpec((tm, 1), lambda i: (i, 0)),   # targets row-block
        ],
        out_specs=pl.BlockSpec((1, 1), lambda i: (i, 0), memory_space=pltpu.SMEM),
        compiler_params=pltpu.CompilerParams(
            dimension_semantics=("parallel",),          # disjoint per-block outputs
            vmem_limit_bytes=64 * 1024 * 1024,
        ),
    )(x, t2d)

    return jnp.sum(partials) / jnp.float32(n)


def _reference(x, target, smoothing=0.1):
    confidence = 1.0 - smoothing
    logprobs = jax.nn.log_softmax(x.astype(jnp.float32), axis=-1)
    nll = -jnp.take_along_axis(logprobs, target[:, None], axis=-1)[:, 0]
    smooth = -jnp.mean(logprobs, axis=-1)
    return jnp.mean(confidence * nll + smoothing * smooth)


if __name__ == "__main__":
    key = jax.random.PRNGKey(0)
    kx, kt = jax.random.split(key)

    # Small case matching the module's forward (batch of logits + class indices).
    N, C = 8, 32
    smoothing = 0.1
    x = jax.random.normal(kx, (N, C), dtype=jnp.float32)
    target = jax.random.randint(kt, (N,), 0, C, dtype=jnp.int32)

    loss = label_smoothing_loss(x, target, smoothing=smoothing)
    loss = jax.block_until_ready(loss)
    ref = _reference(x, target, smoothing=smoothing)
    assert jnp.allclose(loss, ref, atol=1e-5, rtol=1e-5), (loss, ref)

    # Multi-block path with a remainder block (exercises masking + grid).
    N2, C2 = 300, 512
    x2 = jax.random.normal(kx, (N2, C2), dtype=jnp.float32)
    t2 = jax.random.randint(kt, (N2,), 0, C2, dtype=jnp.int32)
    loss2 = label_smoothing_loss(x2, t2, smoothing=smoothing, block_rows=128)
    loss2 = jax.block_until_ready(loss2)
    ref2 = _reference(x2, t2, smoothing=smoothing)
    assert jnp.allclose(loss2, ref2, atol=1e-5, rtol=1e-5), (loss2, ref2)

    print("KERNEL_OK")
</pallas_src>

<mosaic_0001>
module attributes {stable_mosaic.version = 11 : i64} {
  func.func @_label_smoothing_kernel(%arg0: i32, %arg1: memref<8x32xf32, #tpu.memory_space<vmem>>, %arg2: memref<8x1xi32, #tpu.memory_space<vmem>>, %arg3: memref<1x1xf32, #tpu.memory_space<smem>>) attributes {dimension_semantics = [#tpu.dimension_semantics<parallel>], iteration_bounds = array<i64: 1>, scalar_prefetch = 0 : i64, scratch_operands = 0 : i64, tpu.core_type = #tpu.core_type<tc>, window_params = [{transform_indices = @transform_0, window_bounds = array<i64: 8, 32>}, {transform_indices = @transform_1, window_bounds = array<i64: 8, 1>}, {transform_indices = @transform_2, window_bounds = array<i64: 1, 1>}]} {
    %c0 = arith.constant 0 : index
    %c0_0 = arith.constant 0 : index
    %0 = vector.load %arg1[%c0, %c0_0] : memref<8x32xf32, #tpu.memory_space<vmem>>, vector<8x32xf32>
    %c0_1 = arith.constant 0 : index
    %c0_2 = arith.constant 0 : index
    %1 = vector.load %arg2[%c0_1, %c0_2] : memref<8x1xi32, #tpu.memory_space<vmem>>, vector<8x1xi32>
    %cst = arith.constant dense<0xFF800000> : vector<8xf32>
    %2 = vector.multi_reduction <maximumf>, %0, %cst [1] : vector<8x32xf32> to vector<8xf32>
    %3 = vector.shape_cast %2 : vector<8xf32> to vector<8x1xf32>
    %4 = vector.broadcast %3 : vector<8x1xf32> to vector<8x32xf32>
    %5 = arith.subf %0, %4 : vector<8x32xf32>
    %6 = math.exp %5 : vector<8x32xf32>
    %cst_3 = arith.constant dense<0.000000e+00> : vector<8xf32>
    %7 = vector.multi_reduction <add>, %6, %cst_3 [1] : vector<8x32xf32> to vector<8xf32>
    %8 = vector.shape_cast %7 : vector<8xf32> to vector<8x1xf32>
    %9 = math.log %8 : vector<8x1xf32>
    %10 = tpu.iota {dimensions = array<i32: 1>} : vector<8x32xi32>
    %11 = vector.broadcast %1 : vector<8x1xi32> to vector<8x32xi32>
    %12 = arith.cmpi eq, %10, %11 : vector<8x32xi32>
    %cst_4 = arith.constant 0.000000e+00 : f32
    %13 = vector.broadcast %cst_4 : f32 to vector<8x32xf32>
    %14 = arith.select %12, %5, %13 : vector<8x32xi1>, vector<8x32xf32>
    %cst_5 = arith.constant dense<0.000000e+00> : vector<8xf32>
    %15 = vector.multi_reduction <add>, %14, %cst_5 [1] : vector<8x32xf32> to vector<8xf32>
    %16 = vector.shape_cast %15 : vector<8xf32> to vector<8x1xf32>
    %cst_6 = arith.constant dense<0.000000e+00> : vector<8xf32>
    %17 = vector.multi_reduction <add>, %5, %cst_6 [1] : vector<8x32xf32> to vector<8xf32>
    %18 = vector.shape_cast %17 : vector<8xf32> to vector<8x1xf32>
    %cst_7 = arith.constant 1.000000e+00 : f32
    %19 = vector.broadcast %cst_7 : f32 to vector<8x1xf32>
    %20 = arith.mulf %19, %9 : vector<8x1xf32>
    %cst_8 = arith.constant 0.899999976 : f32
    %21 = vector.broadcast %cst_8 : f32 to vector<8x1xf32>
    %22 = arith.mulf %21, %16 : vector<8x1xf32>
    %23 = arith.subf %20, %22 : vector<8x1xf32>
    %cst_9 = arith.constant 3.125000e-03 : f32
    %24 = vector.broadcast %cst_9 : f32 to vector<8x1xf32>
    %25 = arith.mulf %24, %18 : vector<8x1xf32>
    %26 = arith.subf %23, %25 : vector<8x1xf32>
    %27 = tpu.iota {dimensions = array<i32: 0>} : vector<8x1xi32>
    %c8_i32 = arith.constant 8 : i32
    %28 = arith.muli %arg0, %c8_i32 : i32
    %29 = vector.broadcast %28 : i32 to vector<8x1xi32>
    %30 = arith.addi %27, %29 : vector<8x1xi32>
    %c8_i32_10 = arith.constant 8 : i32
    %31 = vector.broadcast %c8_i32_10 : i32 to vector<8x1xi32>
    %32 = arith.cmpi slt, %30, %31 : vector<8x1xi32>
    %cst_11 = arith.constant 0.000000e+00 : f32
    %33 = vector.broadcast %cst_11 : f32 to vector<8x1xf32>
    %34 = arith.select %32, %26, %33 : vector<8x1xi1>, vector<8x1xf32>
    %35 = vector.shape_cast %34 : vector<8x1xf32> to vector<1x8x1xf32>
    %cst_12 = arith.constant dense<0.000000e+00> : vector<1xf32>
    %36 = vector.multi_reduction <add>, %35, %cst_12 [1, 2] : vector<1x8x1xf32> to vector<1xf32>
    %37 = vector.shape_cast %36 : vector<1xf32> to vector<1x1x1xf32>
    %38 = vector.extract %37[0, 0, 0] : f32 from vector<1x1x1xf32>
    %c0_13 = arith.constant 0 : index
    %c0_14 = arith.constant 0 : index
    %39 = memref.load %arg3[%c0_13, %c0_14] : memref<1x1xf32, #tpu.memory_space<smem>>
    memref.store %38, %arg3[%c0_13, %c0_14] : memref<1x1xf32, #tpu.memory_space<smem>>
    return
  }
  func.func @transform_0(%arg0: i32) -> (i32, i32) {
    %c0_i32 = arith.constant 0 : i32
    %c0_i32_0 = arith.constant 0 : i32
    return %arg0, %c0_i32 : i32, i32
  }
  func.func @transform_1(%arg0: i32) -> (i32, i32) {
    %c0_i32 = arith.constant 0 : i32
    %c0_i32_0 = arith.constant 0 : i32
    return %arg0, %c0_i32 : i32, i32
  }
  func.func @transform_2(%arg0: i32) -> (i32, i32) {
    %c0_i32 = arith.constant 0 : i32
    %c0_i32_0 = arith.constant 0 : i32
    return %arg0, %c0_i32 : i32, i32
  }
}

</mosaic_0001>

<llo_original>
// kernel: tpu_custom_call.1
$region0: #{tpu_custom_call.1}
  #allocation0 [shape = 'u32[]', space=smem, size = 0x4, offset = 0x4, fixed_abs, tag = 'smem constant byte address 0x4 - core index']
  #allocation1 [shape = 'u32[144,128]{1,0:T(1,128)}', space=vmem, size = 0x12000, scoped, tag = 'internal scratch']
  %s0 = inlined_call_operand.hbm [shape: f32[8,32], index: 0, kind: input, shape index: {}]
  %s1 = inlined_call_operand.hbm [shape: s32[8,1], index: 1, kind: input, shape index: {}]
  %s2 = inlined_call_operand.hbm [shape: f32[1,1], index: 2, kind: output, shape index: {}]
  %s3 = sld [smem:[#allocation0]]
  $region26: #{tpu_custom_call.1} parent=0
    _
  %s5 = ssub.s32 1, %s3
  %s6 = scalar_select 0, %s5, %s3
  $region1: #{tpu_custom_call.1} parent=0
    #allocation2 [shape = 'u8[4096]{0}', space=vmem, size = 0x1000, scoped, tag = 'input window, operand 0, single buffered']
    #allocation3 [shape = 's32[1]{0}', space=sflag, size = 0x4, scoped, tag = 'scoped memory for tpu_custom_call.1']
    #allocation4 [shape = 's32[1]{0}', space=sflag, size = 0x4, scoped, tag = 'scoped memory for tpu_custom_call.1']
    #allocation5 [shape = 'u8[4096]{0}', space=vmem, size = 0x1000, scoped, tag = 'input window, operand 1, single buffered']
    #allocation6 [shape = 's32[1]{0}', space=sflag, size = 0x4, scoped, tag = 'scoped memory for tpu_custom_call.1']
    #allocation7 [shape = 'u8[512]{0}', space=smem, size = 0x200, scoped, tag = 'output window, operand 0, single buffered']
    %7 = vsyncpa [#allocation3], 0
    %8 = vsyncpa [#allocation6], 0
    %9 = vsyncpa [#allocation4], 0
    // Predicated region
    $region2: #{tpu_custom_call.1} parent=1 // pred_check
      _
    $region3: #{tpu_custom_call.1} parent=1 // pred_check_branch
      %11 = sbr.rel (0) target = $region5
    $region4: #{tpu_custom_call.1} parent=1 // pred_region
      %s13 = ssub.s32 128, 128
      %14 = vsyncadd [#allocation3], %s13
      %s16 = sshll.u32 [#allocation2], 4
      %s17 = int_to_ptr.vmem [resolvable:$true] %s16
      %19 = dma.hbm_to_vmem [thread:$0]  %s0, 128, %s17, [#allocation3]
    $region5: #{tpu_custom_call.1} parent=1 // pred_fallthru
      _
    // Predicated region
    $region6: #{tpu_custom_call.1} parent=1 // pred_check
      _
    $region7: #{tpu_custom_call.1} parent=1 // pred_check_branch
      %21 = sbr.rel (0) target = $region9
    $region8: #{tpu_custom_call.1} parent=1 // pred_region
      %s23 = ssub.s32 128, 128
      %24 = vsyncadd [#allocation6], %s23
      %s26 = sshll.u32 [#allocation5], 4
      %s27 = int_to_ptr.vmem [resolvable:$true] %s26
      %29 = dma.hbm_to_vmem [thread:$0]  %s1, 128, %s27, [#allocation6]
    $region9: #{tpu_custom_call.1} parent=1 // pred_fallthru
      _
    // Predicated region
    $region10: #{tpu_custom_call.1} parent=1 // pred_check
      _
    $region11: #{tpu_custom_call.1} parent=1 // pred_check_branch
      %31 = sbr.rel (0) target = $region13
    $region12: #{tpu_custom_call.1} parent=1 // pred_region
      %32 = dma.done [#allocation3], 128
    $region13: #{tpu_custom_call.1} parent=1 // pred_fallthru
      _
    // Predicated region
    $region14: #{tpu_custom_call.1} parent=1 // pred_check
      _
    $region15: #{tpu_custom_call.1} parent=1 // pred_check_branch
      %34 = sbr.rel (0) target = $region17
    $region16: #{tpu_custom_call.1} parent=1 // pred_region
      %35 = dma.done [#allocation6], 128
    $region17: #{tpu_custom_call.1} parent=1 // pred_fallthru
      _
    %v36 = vld [vmem:[#allocation2] sm:$0xff]
    %v37 = vld [vmem:[#allocation5] sm:$0xff]
    %vm38 = vcmask 261120
    %v39 = vsel %vm38, %v36, -inf
    %40 = vmax.xlane.f32.xlu0 %v39
    %v41 = vpop.xlane.xlu0 %40
    %v42 = vsub.f32 %v36, %v41
    %v43 = vmul.f32 %v42, 1.442695
    %v44 = vpow.pop %v43
    %v45 = vsel %vm38, %v44, 0.0
    %46 = vadd.xlane.f32.xlu0 %v45
    %v47 = vpop.xlane.xlu0 %46
    %v48 = vlog2.pop %v47
    %v49 = vmul.f32 %v48, 0.6931472
    %v50 = vlaneseq
    %v51 = vand.u32 %v50, 127
    %52 = vset.pattern.permute.xlu0 0
    %53 = vperm.xlu0 %52, %v37
    %v54 = vpop.permute.xlu0 %53
    %vm55 = vcmp.eq.s32.totalorder %v51, %v54
    %v56 = vsel %vm55, %v42, 0.0
    %v57 = vsel %vm38, %v56, 0.0
    %58 = vadd.xlane.f32.xlu0 %v57
    %v59 = vpop.xlane.xlu0 %58
    %v60 = vsel %vm38, %v42, 0.0
    %61 = vadd.xlane.f32.xlu0 %v60
    %v62 = vpop.xlane.xlu0 %61
    %v63 = vmul.f32 %v59, 0.9
    %v64 = vsub.f32 %v49, %v63
    %v65 = vmul.f32 %v62, 0.003125
    %v66 = vsub.f32 %v64, %v65
    %v67 = vlaneseq
    %v68 = vshrl.u32 %v67, 7
    %s69 = smul.u32 0, 8
    %v70 = vstv %s69
    %v71 = vadd.s32 %v68, %v70
    %vm72 = vcmp.lt.s32.totalorder %v71, 8
    %v73 = vsel %vm72, %v66, 0.0
    %vm74 = vcmask 7168
    %v75 = vsel %vm74, %v73, 0.0
    %76 = vadd.xlane.f32.xlu0 %v75
    %v77 = vpop.xlane.xlu0 %76
    %v78 = vrot.slane %v77, 4
    %v79 = vadd.f32 %v77, %v78
    %v80 = vrot.slane %v79, 2
    %v81 = vadd.f32 %v79, %v80
    %v82 = vrot.slane %v81, 1
    %v83 = vadd.f32 %v81, %v82
    %s84 = vtos %v83
    %s85 = scalar_lea.smem [#allocation7], 0
    %86 = sst [smem:[%s85]] %s84
    // Predicated region
    $region18: #{tpu_custom_call.1} parent=1 // pred_check
      _
    $region19: #{tpu_custom_call.1} parent=1 // pred_check_branch
      %88 = sbr.rel (0) target = $region21
    $region20: #{tpu_custom_call.1} parent=1 // pred_region
      %s90 = ssub.s32 16, 16
      %91 = vsyncadd [#allocation4], %s90
      %94 = dma.smem_to_hbm [#allocation7], 16, %s2, [#allocation4]
    $region21: #{tpu_custom_call.1} parent=1 // pred_fallthru
      _
    // Predicated region
    $region22: #{tpu_custom_call.1} parent=1 // pred_check
      _
    $region23: #{tpu_custom_call.1} parent=1 // pred_check_branch
      %96 = sbr.rel (0) target = $region25
    $region24: #{tpu_custom_call.1} parent=1 // pred_region
      %97 = dma.done [#allocation4], 16
    $region25: #{tpu_custom_call.1} parent=1 // pred_fallthru
      _
    %98 = sfence
    %99 = vsyncpa [#allocation3], 1
    %100 = vsyncpa [#allocation6], 1
    %101 = vsyncpa [#allocation4], 1

</llo_original>
